<compile_context>
chip_gen: v5e
topology: v5e:2x2
jax: 0.10.0
libtpu: 0.0.40
codegen_flags: <defaults>
</compile_context>

<pallas_src>
import math

import jax
import jax.numpy as jnp
from jax.experimental import pallas as pl
from jax.experimental.pallas import tpu as pltpu


_MAX_TILE = 2048
_MIN_GRID_STEPS = 8          # keep both v7x TensorCores busy when possible


def _round_up(x, m):
    return ((x + m - 1) // m) * m


def _cdiv(a, b):
    return (a + b - 1) // b


def _vmem_budgets():
    """(vmem_limit_bytes, per-step tile budget) tuned per TPU generation."""
    cap = 64 * 1024 * 1024                      # conservative default (v7x-sized)
    try:
        cap = int(pltpu.get_tpu_info().vmem_capacity_bytes)
    except Exception:
        pass
    if cap >= 96 * 1024 * 1024:                 # v5e / v6e: 128 MiB physical VMEM
        return 104 * 1024 * 1024, 72 * 1024 * 1024
    # v7x: 64 MiB physical; leave compiler-scratch headroom.
    return 52 * 1024 * 1024, 36 * 1024 * 1024


def _tile_candidates(dim, mult):
    """Sublane-legal tile sizes: the full dim (always a legal block shape) plus
    multiples of `mult`.  Non-divisors are allowed (handled by host padding of
    ha/hp + an output slice) but exact divisors are preferred downstream."""
    cands = {dim}
    c = mult
    while c < dim and c <= _MAX_TILE:
        cands.add(c)
        c += mult
    return sorted(cands)


def _footprint_bytes(tile_t, tile_s, J, P, out_bytes, mm_bytes):
    """Approximate per-grid-step VMEM footprint of the joint kernel."""
    j_lane = _round_up(J, 128)
    if P > 1:
        lanes = P * J                             # 128: lane-dense, no lane padding
        rows = tile_t * (tile_s // P)
    else:
        lanes = j_lane                            # J lane-pads up to 128 in VMEM
        rows = tile_t * tile_s
    fp = 2 * rows * lanes * out_bytes             # double-buffered output block
    fp += rows * lanes * 4                        # h intermediate (f32, lane-padded)
    fp += rows * lanes * 4                        # f32 GEMM result before final cast
    if mm_bytes != 4:
        fp += rows * lanes * mm_bytes             # matmul-dtype copy of h fed to MXU
    fp += 2 * (tile_t + tile_s) * j_lane * mm_bytes   # double-buffered ha / hp blocks
    fp += (P * J) * (P * J) * mm_bytes + (P * J) * 4  # W2 (block-diag) + b2
    return fp


def _pick_tiles(B, T, S, J, P, budget_bytes, out_bytes, mm_bytes):
    """Largest legal (tile_t, tile_s) under the VMEM budget; prefer exact
    divisors (no padded-edge output copy), then >= _MIN_GRID_STEPS grid steps,
    then the largest tile_s (HBM-contiguity axis of the output)."""
    cands_t = _tile_candidates(T, 8)
    cands_s = _tile_candidates(S, 8 * P)
    fits = [(tt, ts) for tt in cands_t for ts in cands_s
            if _footprint_bytes(tt, ts, J, P, out_bytes, mm_bytes) <= budget_bytes]
    if not fits:
        return min(T, 8), min(S, 8 * P)

    def steps(c):
        return B * _cdiv(T, c[0]) * _cdiv(S, c[1])

    exact = [c for c in fits if T % c[0] == 0 and S % c[1] == 0] or fits
    pref = [c for c in exact if steps(c) >= _MIN_GRID_STEPS] or exact
    return max(pref, key=lambda c: (c[1], c[0] * c[1], c[0]))


# --------------------------------------------------------------------------- #
# Kernels
# --------------------------------------------------------------------------- #
def _project_kernel(a_ref, p_ref, wa_ref, wp_ref, b1_ref, ha_ref, hp_ref):
    # a_ref: (1, T, Ca)  p_ref: (1, S, Cp)  wa: (Ca, J)  wp: (Cp, J)  b1: (1, J)
    a = a_ref[0].astype(wa_ref.dtype)
    p = p_ref[0].astype(wp_ref.dtype)
    ha = jnp.dot(a, wa_ref[...], preferred_element_type=jnp.float32)    # (T, J)
    hp = jnp.dot(p, wp_ref[...], preferred_element_type=jnp.float32)    # (S, J)
    ha_ref[0] = (ha + b1_ref[0][None, :]).astype(ha_ref.dtype)          # fold b1 once
    hp_ref[0] = hp.astype(hp_ref.dtype)


def _joint_kernel_wide(ha_ref, hp_ref, w2_ref, b2_ref, o_ref):
    # ha: (1, tT, J); hp packed lane-dense: (1, tS//P, P*J);
    # w2: block-diagonal (P*J, P*J); b2: (1, P*J); o: (1, tT, tS//P, P*J).
    ha = ha_ref[0].astype(jnp.float32)                         # (tT, J), b1 folded
    hpw = hp_ref[0].astype(jnp.float32)                        # (tS//P, P*J)
    P = hpw.shape[-1] // ha.shape[-1]
    ha_wide = jnp.concatenate([ha] * P, axis=-1)               # (tT, P*J) lane-replicate
    h = jnp.maximum(ha_wide[:, None, :] + hpw[None, :, :], 0.0)  # (tT, tS//P, P*J) f32
    tT, tSw, L = h.shape
    h2 = h.reshape(tT * tSw, L).astype(w2_ref.dtype)           # leading merge: layout-free
    out = jnp.dot(h2, w2_ref[...], preferred_element_type=jnp.float32)   # (tT*tSw, 128)
    out = out + b2_ref[0][None, :]
    o_ref[0] = out.reshape(tT, tSw, L).astype(o_ref.dtype)     # lane-dense store


def _joint_kernel_narrow(ha_ref, hp_ref, w2_ref, b2_ref, o_ref):
    # Fallback when J does not divide 128 (or S % P != 0).
    ha = ha_ref[0].astype(jnp.float32)                         # (tT, J), b1 folded
    hp = hp_ref[0].astype(jnp.float32)                         # (tS, J)
    h = jnp.maximum(ha[:, None, :] + hp[None, :, :], 0.0)      # (tT, tS, J) f32 VPU
    tT, tS, J = h.shape
    h2 = h.reshape(tT * tS, J).astype(w2_ref.dtype)
    out = jnp.dot(h2, w2_ref[...], preferred_element_type=jnp.float32)   # (tT*tS, J)
    out = out + b2_ref[0][None, :]
    o_ref[0] = out.reshape(tT, tS, J).astype(o_ref.dtype)


# --------------------------------------------------------------------------- #
# Wrapper
# --------------------------------------------------------------------------- #
def joint_network(acoustic_BTC, prediction_BSC, W1, b1, W2, b2, *,
                  tile_t=None, tile_s=None,
                  matmul_dtype=jnp.float32, out_dtype=jnp.bfloat16):
    """Pallas implementation of JointNetwork.forward -> [B, T, S, J].

    out_dtype defaults to bf16 (f32 accumulation everywhere; only the final
    store is rounded).  Pass out_dtype=jnp.float32 for exact module numerics.
    matmul_dtype=jnp.bfloat16 additionally casts GEMM operands and the stored
    ha/hp projections (faster, looser tolerance)."""
    B, T, Ca = acoustic_BTC.shape
    Bp, S, Cp = prediction_BSC.shape
    assert B == Bp
    J = W1.shape[0]
    assert W1.shape == (J, Ca + Cp) and W2.shape == (J, J)
    assert b1.shape == (J,) and b2.shape == (J,)

    vmem_limit, tile_budget = _vmem_budgets()
    out_bytes = jnp.dtype(out_dtype).itemsize
    mm_bytes = jnp.dtype(matmul_dtype).itemsize

    # Lane-dense output packing: P = 128//J joint rows per 128-lane output row.
    use_wide = (J < 128) and (128 % J == 0) and (S % (128 // J) == 0)
    P = (128 // J) if use_wide else 1

    # Split the concat-linear weight and transpose to (in, out):
    #   concat([A, P], -1) @ W1^T == A @ W1a^T + P @ W1p^T   (outer-broadcast add)
    wa = W1[:, :Ca].T.astype(matmul_dtype)            # (Ca, J)
    wp = W1[:, Ca:].T.astype(matmul_dtype)            # (Cp, J)
    b1_2d = b1.reshape(1, J).astype(jnp.float32)

    # ---- pass 1: per-batch projections (hoisted out of the joint tile loop) ----
    # Note: holds full (T, Ca)/(S, Cp) rows per batch; fine for typical
    # transducer T/S and well under the per-generation vmem limit.
    ha, hp = pl.pallas_call(
        _project_kernel,
        out_shape=(jax.ShapeDtypeStruct((B, T, J), matmul_dtype),
                   jax.ShapeDtypeStruct((B, S, J), matmul_dtype)),
        grid_spec=pltpu.PrefetchScalarGridSpec(
            num_scalar_prefetch=0,
            grid=(B,),
            in_specs=[
                pl.BlockSpec((1, T, Ca), lambda b: (b, 0, 0)),
                pl.BlockSpec((1, S, Cp), lambda b: (b, 0, 0)),
                pl.BlockSpec((Ca, J), lambda b: (0, 0)),
                pl.BlockSpec((Cp, J), lambda b: (0, 0)),
                pl.BlockSpec((1, J), lambda b: (0, 0)),
            ],
            out_specs=[
                pl.BlockSpec((1, T, J), lambda b: (b, 0, 0)),
                pl.BlockSpec((1, S, J), lambda b: (b, 0, 0)),
            ],
        ),
        compiler_params=pltpu.CompilerParams(
            dimension_semantics=("parallel",),
            vmem_limit_bytes=vmem_limit,
        ),
    )(acoustic_BTC, prediction_BSC, wa, wp, b1_2d)

    # ---- tile selection (generation-aware budget) ----
    if tile_t is None or tile_s is None:
        auto_t, auto_s = _pick_tiles(B, T, S, J, P, tile_budget, out_bytes, mm_bytes)
        if tile_t is None:
            tile_t = auto_t
        if tile_s is None:
            tile_s = auto_s
    if use_wide:
        assert tile_s % P == 0, "tile_s must be a multiple of 128 // J on the lane-dense path"

    # ---- host-side padding for non-divisible T / S (cheap: ha/hp are small) ----
    Tpad = _cdiv(T, tile_t) * tile_t
    Spad = _cdiv(S, tile_s) * tile_s
    if Tpad != T:
        ha = jnp.pad(ha, ((0, 0), (0, Tpad - T), (0, 0)))
    if Spad != S:
        hp = jnp.pad(hp, ((0, 0), (0, Spad - S), (0, 0)))

    w2t = W2.T.astype(jnp.float32)                    # (J, J), (in, out)
    if use_wide:
        # Block-diagonal packing: [ [W2^T, 0], [0, W2^T], ... ]  (P blocks).
        w2_in = jnp.kron(jnp.eye(P, dtype=jnp.float32), w2t).astype(matmul_dtype)
        b2_in = jnp.tile(b2.astype(jnp.float32), P).reshape(1, P * J)
        hp_in = hp.reshape(B, Spad // P, P * J)       # trailing merge: metadata only
        ts_w = tile_s // P
        out_shape = jax.ShapeDtypeStruct((B, Tpad, Spad // P, P * J), out_dtype)
        out_block = (1, tile_t, ts_w, P * J)
        hp_spec = pl.BlockSpec((1, ts_w, P * J), lambda b, ti, si: (b, si, 0))
        kernel = _joint_kernel_wide
    else:
        w2_in = w2t.astype(matmul_dtype)
        b2_in = b2.reshape(1, J).astype(jnp.float32)
        hp_in = hp
        out_shape = jax.ShapeDtypeStruct((B, Tpad, Spad, J), out_dtype)
        out_block = (1, tile_t, tile_s, J)
        hp_spec = pl.BlockSpec((1, tile_s, J), lambda b, ti, si: (b, si, 0))
        kernel = _joint_kernel_narrow

    WJ = w2_in.shape[0]
    grid = (B, Tpad // tile_t, Spad // tile_s)

    # ---- pass 2: tiled joint (broadcast + ReLU + one output GEMM per tile) ----
    out = pl.pallas_call(
        kernel,
        out_shape=out_shape,
        grid_spec=pltpu.PrefetchScalarGridSpec(
            num_scalar_prefetch=0,
            grid=grid,
            in_specs=[
                pl.BlockSpec((1, tile_t, J), lambda b, ti, si: (b, ti, 0)),
                hp_spec,
                pl.BlockSpec((WJ, WJ), lambda b, ti, si: (0, 0)),
                pl.BlockSpec((1, WJ), lambda b, ti, si: (0, 0)),
            ],
            out_specs=pl.BlockSpec(out_block, lambda b, ti, si: (b, ti, si, 0)),
        ),
        compiler_params=pltpu.CompilerParams(
            # All output blocks are disjoint -> every grid axis is parallel.
            dimension_semantics=("parallel", "parallel", "parallel"),
            vmem_limit_bytes=vmem_limit,
        ),
    )(ha, hp_in, w2_in, b2_in)

    if use_wide:
        out = out.reshape(B, Tpad, Spad, J)           # trailing split: metadata only
    if Tpad != T or Spad != S:
        out = out[:, :T, :S, :]                       # padded-edge case only
    return out


def reference(acoustic_BTC, prediction_BSC, W1, b1, W2, b2):
    """Pure-JAX reference mirroring the PyTorch module exactly (concat form)."""
    B, T, Ca = acoustic_BTC.shape
    S, Cp = prediction_BSC.shape[1], prediction_BSC.shape[2]
    a_exp = jnp.broadcast_to(acoustic_BTC[:, :, None, :], (B, T, S, Ca))
    p_exp = jnp.broadcast_to(prediction_BSC[:, None, :, :], (B, T, S, Cp))
    x = jnp.concatenate([a_exp, p_exp], axis=-1)
    h = jnp.maximum(x @ W1.T + b1, 0.0)
    return h @ W2.T + b2


if __name__ == "__main__":
    # Small shapes consistent with the module (JOINT_DIM = 64).
    B, T, S = 2, 8, 8
    acoustic_dim, prediction_dim, joint_dim = 32, 32, 64

    key = jax.random.PRNGKey(0)
    k_w1, k_w2, k_a, k_p, k_b1, k_b2 = jax.random.split(key, 6)

    # Xavier-uniform weights / zero biases, mirroring _init_weights().
    fan_in1 = acoustic_dim + prediction_dim
    bound1 = math.sqrt(6.0 / (fan_in1 + joint_dim))
    W1 = jax.random.uniform(k_w1, (joint_dim, fan_in1),
                            minval=-bound1, maxval=bound1, dtype=jnp.float32)
    b1 = jnp.zeros((joint_dim,), dtype=jnp.float32)
    bound2 = math.sqrt(6.0 / (joint_dim + joint_dim))
    W2 = jax.random.uniform(k_w2, (joint_dim, joint_dim),
                            minval=-bound2, maxval=bound2, dtype=jnp.float32)
    b2 = jnp.zeros((joint_dim,), dtype=jnp.float32)

    acoustic = jax.random.normal(k_a, (B, T, acoustic_dim), dtype=jnp.float32)
    prediction = jax.random.normal(k_p, (B, S, prediction_dim), dtype=jnp.float32)
    ref = reference(acoustic, prediction, W1, b1, W2, b2)

    # 1) Default path: lane-dense wide store, bf16 output (f32 accumulation).
    out = jax.block_until_ready(joint_network(acoustic, prediction, W1, b1, W2, b2))
    assert out.shape == (B, T, S, joint_dim)
    assert out.dtype == jnp.bfloat16
    assert jnp.allclose(out.astype(jnp.float32), ref, atol=2e-2, rtol=2e-2)

    # 2) Exact f32 output (module-faithful numerics).
    out_f32 = jax.block_until_ready(
        joint_network(acoustic, prediction, W1, b1, W2, b2, out_dtype=jnp.float32))
    assert jnp.allclose(out_f32, ref, atol=1e-5, rtol=1e-5)

    # 3) Non-zero biases (exercises the b1-fold and b2-add paths).
    b1_nz = 0.1 * jax.random.normal(k_b1, (joint_dim,), dtype=jnp.float32)
    b2_nz = 0.1 * jax.random.normal(k_b2, (joint_dim,), dtype=jnp.float32)
    out_nz = jax.block_until_ready(
        joint_network(acoustic, prediction, W1, b1_nz, W2, b2_nz, out_dtype=jnp.float32))
    assert jnp.allclose(out_nz, reference(acoustic, prediction, W1, b1_nz, W2, b2_nz),
                        atol=1e-5, rtol=1e-5)

    # 4) Odd T / odd S: narrow fallback path, full-dim blocks, no padding.
    a_odd = jax.random.normal(k_a, (B, 5, acoustic_dim), dtype=jnp.float32)
    p_odd = jax.random.normal(k_p, (B, 7, prediction_dim), dtype=jnp.float32)
    out_odd = jax.block_until_ready(
        joint_network(a_odd, p_odd, W1, b1, W2, b2, out_dtype=jnp.float32))
    assert out_odd.shape == (B, 5, 7, joint_dim)
    assert jnp.allclose(out_odd, reference(a_odd, p_odd, W1, b1, W2, b2),
                        atol=1e-5, rtol=1e-5)

    # 5) Non-divisible T/S with explicit tiles: padding + output slice path.
    a_pad = jax.random.normal(k_a, (B, 5, acoustic_dim), dtype=jnp.float32)
    p_pad = jax.random.normal(k_p, (B, 6, prediction_dim), dtype=jnp.float32)
    out_pad = jax.block_until_ready(
        joint_network(a_pad, p_pad, W1, b1, W2, b2,
                      tile_t=8, tile_s=8, out_dtype=jnp.float32))
    assert out_pad.shape == (B, 5, 6, joint_dim)
    assert jnp.allclose(out_pad, reference(a_pad, p_pad, W1, b1, W2, b2),
                        atol=1e-5, rtol=1e-5)

    print("KERNEL_OK")
</pallas_src>

<mosaic_0001>
module attributes {stable_mosaic.version = 11 : i64} {
  func.func @_project_kernel(%arg0: i32, %arg1: memref<1x8x32xf32, #tpu.memory_space<vmem>>, %arg2: memref<1x8x32xf32, #tpu.memory_space<vmem>>, %arg3: memref<32x64xf32, #tpu.memory_space<vmem>>, %arg4: memref<32x64xf32, #tpu.memory_space<vmem>>, %arg5: memref<1x64xf32, #tpu.memory_space<vmem>>, %arg6: memref<1x8x64xf32, #tpu.memory_space<vmem>>, %arg7: memref<1x8x64xf32, #tpu.memory_space<vmem>>) attributes {dimension_semantics = [#tpu.dimension_semantics<parallel>], iteration_bounds = array<i64: 2>, scalar_prefetch = 0 : i64, scratch_operands = 0 : i64, tpu.core_type = #tpu.core_type<tc>, window_params = [{transform_indices = @transform_0, window_bounds = array<i64: 1, 8, 32>}, {transform_indices = @transform_1, window_bounds = array<i64: 1, 8, 32>}, {pipeline_mode = #tpu.pipeline_mode<synchronous>, transform_indices = @transform_2, window_bounds = array<i64: 32, 64>}, {pipeline_mode = #tpu.pipeline_mode<synchronous>, transform_indices = @transform_3, window_bounds = array<i64: 32, 64>}, {pipeline_mode = #tpu.pipeline_mode<synchronous>, transform_indices = @transform_4, window_bounds = array<i64: 1, 64>}, {transform_indices = @transform_5, window_bounds = array<i64: 1, 8, 64>}, {transform_indices = @transform_6, window_bounds = array<i64: 1, 8, 64>}]} {
    %c0 = arith.constant 0 : index
    %c0_0 = arith.constant 0 : index
    %c0_1 = arith.constant 0 : index
    %0 = vector.load %arg1[%c0, %c0_0, %c0_1] : memref<1x8x32xf32, #tpu.memory_space<vmem>>, vector<1x8x32xf32>
    %1 = vector.shape_cast %0 : vector<1x8x32xf32> to vector<8x32xf32>
    %c0_2 = arith.constant 0 : index
    %c0_3 = arith.constant 0 : index
    %c0_4 = arith.constant 0 : index
    %2 = vector.load %arg2[%c0_2, %c0_3, %c0_4] : memref<1x8x32xf32, #tpu.memory_space<vmem>>, vector<1x8x32xf32>
    %3 = vector.shape_cast %2 : vector<1x8x32xf32> to vector<8x32xf32>
    %c0_5 = arith.constant 0 : index
    %c0_6 = arith.constant 0 : index
    %4 = vector.load %arg3[%c0_5, %c0_6] : memref<32x64xf32, #tpu.memory_space<vmem>>, vector<32x64xf32>
    %cst = arith.constant dense<0.000000e+00> : vector<8x64xf32>
    %5 = tpu.matmul %1, %4, %cst {dimension_numbers = #tpu.dot_dimension_numbers<[1], [0], [0], [1], [0, 0, 1, 1], [], []>} : vector<8x32xf32>, vector<32x64xf32>, vector<8x64xf32> -> vector<8x64xf32>
    %c0_7 = arith.constant 0 : index
    %c0_8 = arith.constant 0 : index
    %6 = vector.load %arg4[%c0_7, %c0_8] : memref<32x64xf32, #tpu.memory_space<vmem>>, vector<32x64xf32>
    %cst_9 = arith.constant dense<0.000000e+00> : vector<8x64xf32>
    %7 = tpu.matmul %3, %6, %cst_9 {dimension_numbers = #tpu.dot_dimension_numbers<[1], [0], [0], [1], [0, 0, 1, 1], [], []>} : vector<8x32xf32>, vector<32x64xf32>, vector<8x64xf32> -> vector<8x64xf32>
    %c0_10 = arith.constant 0 : index
    %c0_11 = arith.constant 0 : index
    %8 = vector.load %arg5[%c0_10, %c0_11] : memref<1x64xf32, #tpu.memory_space<vmem>>, vector<1x64xf32>
    %9 = vector.shape_cast %8 : vector<1x64xf32> to vector<64xf32>
    %10 = vector.shape_cast %9 : vector<64xf32> to vector<1x64xf32>
    %11 = vector.broadcast %10 : vector<1x64xf32> to vector<8x64xf32>
    %12 = arith.addf %5, %11 : vector<8x64xf32>
    %c0_12 = arith.constant 0 : index
    %c0_13 = arith.constant 0 : index
    %c0_14 = arith.constant 0 : index
    %13 = vector.load %arg6[%c0_12, %c0_13, %c0_14] : memref<1x8x64xf32, #tpu.memory_space<vmem>>, vector<1x8x64xf32>
    %14 = vector.shape_cast %13 : vector<1x8x64xf32> to vector<8x64xf32>
    %15 = vector.shape_cast %12 : vector<8x64xf32> to vector<1x8x64xf32>
    tpu.vector_store %arg6[%c0_12, %c0_13, %c0_14], %15 {strides = array<i32>} : memref<1x8x64xf32, #tpu.memory_space<vmem>>, vector<1x8x64xf32>,
    %c0_15 = arith.constant 0 : index
    %c0_16 = arith.constant 0 : index
    %c0_17 = arith.constant 0 : index
    %16 = vector.load %arg7[%c0_15, %c0_16, %c0_17] : memref<1x8x64xf32, #tpu.memory_space<vmem>>, vector<1x8x64xf32>
    %17 = vector.shape_cast %16 : vector<1x8x64xf32> to vector<8x64xf32>
    %18 = vector.shape_cast %7 : vector<8x64xf32> to vector<1x8x64xf32>
    tpu.vector_store %arg7[%c0_15, %c0_16, %c0_17], %18 {strides = array<i32>} : memref<1x8x64xf32, #tpu.memory_space<vmem>>, vector<1x8x64xf32>,
    return
  }
  func.func @transform_0(%arg0: i32) -> (i32, i32, i32) {
    %c0_i32 = arith.constant 0 : i32
    %c0_i32_0 = arith.constant 0 : i32
    %c0_i32_1 = arith.constant 0 : i32
    return %arg0, %c0_i32, %c0_i32_0 : i32, i32, i32
  }
  func.func @transform_1(%arg0: i32) -> (i32, i32, i32) {
    %c0_i32 = arith.constant 0 : i32
    %c0_i32_0 = arith.constant 0 : i32
    %c0_i32_1 = arith.constant 0 : i32
    return %arg0, %c0_i32, %c0_i32_0 : i32, i32, i32
  }
  func.func @transform_2(%arg0: i32) -> (i32, i32) {
    %c0_i32 = arith.constant 0 : i32
    %c0_i32_0 = arith.constant 0 : i32
    %c0_i32_1 = arith.constant 0 : i32
    return %c0_i32, %c0_i32_0 : i32, i32
  }
  func.func @transform_3(%arg0: i32) -> (i32, i32) {
    %c0_i32 = arith.constant 0 : i32
    %c0_i32_0 = arith.constant 0 : i32
    %c0_i32_1 = arith.constant 0 : i32
    return %c0_i32, %c0_i32_0 : i32, i32
  }
  func.func @transform_4(%arg0: i32) -> (i32, i32) {
    %c0_i32 = arith.constant 0 : i32
    %c0_i32_0 = arith.constant 0 : i32
    %c0_i32_1 = arith.constant 0 : i32
    return %c0_i32, %c0_i32_0 : i32, i32
  }
  func.func @transform_5(%arg0: i32) -> (i32, i32, i32) {
    %c0_i32 = arith.constant 0 : i32
    %c0_i32_0 = arith.constant 0 : i32
    %c0_i32_1 = arith.constant 0 : i32
    return %arg0, %c0_i32, %c0_i32_0 : i32, i32, i32
  }
  func.func @transform_6(%arg0: i32) -> (i32, i32, i32) {
    %c0_i32 = arith.constant 0 : i32
    %c0_i32_0 = arith.constant 0 : i32
    %c0_i32_1 = arith.constant 0 : i32
    return %arg0, %c0_i32, %c0_i32_0 : i32, i32, i32
  }
}

</mosaic_0001>

<llo_original>
// kernel: tpu_custom_call.1
$region0: #{tpu_custom_call.1}
  #allocation0 [shape = 'u32[]', space=smem, size = 0x4, offset = 0x4, fixed_abs, tag = 'smem constant byte address 0x4 - core index']
  #allocation1 [shape = 'u32[72,128]{1,0:T(1,128)}', space=vmem, size = 0x9000, scoped, tag = 'internal scratch']
  %s0 = inlined_call_operand.hbm [shape: f32[2,8,32], index: 0, kind: input, shape index: {}]
  %s1 = inlined_call_operand.hbm [shape: f32[2,8,32], index: 1, kind: input, shape index: {}]
  %s2 = inlined_call_operand.hbm [shape: f32[32,64], index: 2, kind: input, shape index: {}]
  %s3 = inlined_call_operand.hbm [shape: f32[32,64], index: 3, kind: input, shape index: {}]
  %s4 = inlined_call_operand.vmem [shape: f32[1,64], index: 4, kind: input, shape index: {}]
  %s5 = inlined_call_operand.hbm [shape: f32[2,8,64], index: 5, kind: output, shape index: {0}]
  %s6 = inlined_call_operand.hbm [shape: f32[2,8,64], index: 6, kind: output, shape index: {1}]
  %7 = xla_tuple %s5, %s6
  %s8 = sld [smem:[#allocation0]]
  $region77: #{tpu_custom_call.1} parent=0
    _
  %s10 = ssub.s32 1, %s8
  %s11 = scalar_select 0, %s10, %s8
  $region1: #{tpu_custom_call.1} parent=0
    #allocation2 [shape = 'u8[8192]{0}', space=vmem, size = 0x2000, scoped, tag = 'input window, operand 0']
    #allocation3 [shape = 's32[2]{0}', space=sflag, size = 0x8, scoped, tag = 'scoped memory for tpu_custom_call.1']
    #allocation4 [shape = 's32[2]{0}', space=sflag, size = 0x8, scoped, tag = 'scoped memory for tpu_custom_call.1']
    #allocation5 [shape = 'u8[8192]{0}', space=vmem, size = 0x2000, scoped, tag = 'input window, operand 1']
    #allocation6 [shape = 's32[2]{0}', space=sflag, size = 0x8, scoped, tag = 'scoped memory for tpu_custom_call.1']
    #allocation7 [shape = 'u8[16384]{0}', space=vmem, size = 0x4000, scoped, tag = 'input window, operand 2, single buffered']
    #allocation8 [shape = 'u8[16384]{0}', space=vmem, size = 0x4000, scoped, tag = 'input window, operand 3, single buffered']
    #allocation9 [shape = 's32[1]{0}', space=sflag, size = 0x4, scoped, tag = 'scoped memory for tpu_custom_call.1']
    #allocation10 [shape = 'u8[8192]{0}', space=vmem, size = 0x2000, scoped, tag = 'output window, operand 0']
    #allocation11 [shape = 'u8[8192]{0}', space=vmem, size = 0x2000, scoped, tag = 'output window, operand 1']
    #allocation12 [shape = 's32[2]{0}', space=sflag, size = 0x8, scoped, tag = 'scoped memory for tpu_custom_call.1']
    %12 = vsyncpa [#allocation3], 0
    %s13 = scalar_lea.sflag [#allocation3], 1
    %14 = vsyncpa %s13, 0
    %15 = vsyncpa [#allocation6], 0
    %s16 = scalar_lea.sflag [#allocation6], 1
    %17 = vsyncpa %s16, 0
    %18 = vsyncpa [#allocation9], 0
    %19 = vsyncpa [#allocation4], 0
    %s20 = scalar_lea.sflag [#allocation4], 1
    %21 = vsyncpa %s20, 0
    %22 = vsyncpa [#allocation12], 0
    %s23 = scalar_lea.sflag [#allocation12], 1
    %24 = vsyncpa %s23, 0
    loop: start=0, step=1, limit=4
    $region2: #{tpu_custom_call.1} parent=1 // loop_pre_header
      _
    $region3: #{tpu_custom_call.1} parent=1 // loop_header
      %s26 = sphi 0, %s30
      %p27 = scmp.ge.s32.totalorder %s26, 4
      %s36 = sphi 0, %s38
      %s39 = sphi 0, %s36
      %s40 = sphi 0, %s39
      %s56 = sphi 0, %s40
      %s62 = sphi 0, %s64
      %s65 = sphi 0, %s62
      %s66 = sphi 0, %s65
      %s82 = sphi 0, %s66
      %s86 = sphi 0, %s86
      %s88 = sphi 0, %s86
      %s89 = sphi 0, %s88
      %s103 = sphi 0, %s89
      %s107 = sphi 0, %s107
      %s109 = sphi 0, %s107
      %s110 = sphi 0, %s109
      %s124 = sphi 0, %s110
      %s128 = sphi 0, %s128
      %s130 = sphi 0, %s128
      %s131 = sphi 0, %s130
      %s145 = sphi 0, %s131
      %s151 = sphi 0, %s153
      %s154 = sphi 0, %s151
      %s155 = sphi 0, %s154
      %s171 = sphi 0, %s155
      %s177 = sphi 0, %s179
      %s180 = sphi 0, %s177
      %s181 = sphi 0, %s180
      %s197 = sphi 0, %s181
    $region4: #{tpu_custom_call.1} parent=1 // loop_header_branch
      %29 = sbr.rel (%p27) target = $region8
    $region5: #{tpu_custom_call.1} parent=1 // loop_body
      %s31 = ssub.s32 %s26, 1
      %s32 = ssub.s32 %s26, 2
      %s33 = sadd.s32 %s26, 1
      %s34 = ssub.s32 %s26, %s33
      %p35 = scmp.eq.s32.totalorder %s34, 0
      %s37 = sadd.s32 %s36, 1
      %s38 = scalar_select %p35, %s36, %s37
      %p41 = pneg %p35
      %p42 = scmp.eq.s32.totalorder %s26, 1
      %p43 = por %p41, %p42
      %p44 = scmp.ne.s32.totalorder %s36, %s39
      %p45 = scmp.eq.s32.totalorder %s26, 0
      %p46 = por %p44, %p45
      %p47 = scmp.ne.s32.totalorder %s36, %s39
      %p48 = scmp.eq.s32.totalorder %s31, 1
      %p49 = por %p47, %p48
      %p50 = scmp.ne.s32.totalorder %s39, %s40
      %p51 = scmp.eq.s32.totalorder %s31, 0
      %p52 = por %p50, %p51
      %p53 = scmp.ne.s32.totalorder %s39, %s40
      %p54 = scmp.eq.s32.totalorder %s32, 1
      %p55 = por %p53, %p54
      %p57 = scmp.ne.s32.totalorder %s40, %s56
      %p58 = scmp.eq.s32.totalorder %s32, 0
      %p59 = por %p57, %p58
      %s60 = ssub.s32 %s26, %s33
      %p61 = scmp.eq.s32.totalorder %s60, 0
      %s63 = sadd.s32 %s62, 1
      %s64 = scalar_select %p61, %s62, %s63
      %p67 = pneg %p61
      %p68 = scmp.eq.s32.totalorder %s26, 1
      %p69 = por %p67, %p68
      %p70 = scmp.ne.s32.totalorder %s62, %s65
      %p71 = scmp.eq.s32.totalorder %s26, 0
      %p72 = por %p70, %p71
      %p73 = scmp.ne.s32.totalorder %s62, %s65
      %p74 = scmp.eq.s32.totalorder %s31, 1
      %p75 = por %p73, %p74
      %p76 = scmp.ne.s32.totalorder %s65, %s66
      %p77 = scmp.eq.s32.totalorder %s31, 0
      %p78 = por %p76, %p77
      %p79 = scmp.ne.s32.totalorder %s65, %s66
      %p80 = scmp.eq.s32.totalorder %s32, 1
      %p81 = por %p79, %p80
      %p83 = scmp.ne.s32.totalorder %s66, %s82
      %p84 = scmp.eq.s32.totalorder %s32, 0
      %p85 = por %p83, %p84
      %s87 = sadd.s32 %s86, 1
      %p90 = scmp.eq.s32.totalorder %s26, 1
      %p91 = scmp.ne.s32.totalorder %s86, %s88
      %p92 = scmp.eq.s32.totalorder %s26, 0
      %p93 = por %p91, %p92
      %p94 = scmp.ne.s32.totalorder %s86, %s88
      %p95 = scmp.eq.s32.totalorder %s31, 1
      %p96 = por %p94, %p95
      %p97 = scmp.ne.s32.totalorder %s88, %s89
      %p98 = scmp.eq.s32.totalorder %s31, 0
      %p99 = por %p97, %p98
      %p100 = scmp.ne.s32.totalorder %s88, %s89
      %p101 = scmp.eq.s32.totalorder %s32, 1
      %p102 = por %p100, %p101
      %p104 = scmp.ne.s32.totalorder %s89, %s103
      %p105 = scmp.eq.s32.totalorder %s32, 0
      %p106 = por %p104, %p105
      %s108 = sadd.s32 %s107, 1
      %p111 = scmp.eq.s32.totalorder %s26, 1
      %p112 = scmp.ne.s32.totalorder %s107, %s109
      %p113 = scmp.eq.s32.totalorder %s26, 0
      %p114 = por %p112, %p113
      %p115 = scmp.ne.s32.totalorder %s107, %s109
      %p116 = scmp.eq.s32.totalorder %s31, 1
      %p117 = por %p115, %p116
      %p118 = scmp.ne.s32.totalorder %s109, %s110
      %p119 = scmp.eq.s32.totalorder %s31, 0
      %p120 = por %p118, %p119
      %p121 = scmp.ne.s32.totalorder %s109, %s110
      %p122 = scmp.eq.s32.totalorder %s32, 1
      %p123 = por %p121, %p122
      %p125 = scmp.ne.s32.totalorder %s110, %s124
      %p126 = scmp.eq.s32.totalorder %s32, 0
      %p127 = por %p125, %p126
      %s129 = sadd.s32 %s128, 1
      %p132 = scmp.eq.s32.totalorder %s26, 1
      %p133 = scmp.ne.s32.totalorder %s128, %s130
      %p134 = scmp.eq.s32.totalorder %s26, 0
      %p135 = por %p133, %p134
      %p136 = scmp.ne.s32.totalorder %s128, %s130
      %p137 = scmp.eq.s32.totalorder %s31, 1
      %p138 = por %p136, %p137
      %p139 = scmp.ne.s32.totalorder %s130, %s131
      %p140 = scmp.eq.s32.totalorder %s31, 0
      %p141 = por %p139, %p140
      %p142 = scmp.ne.s32.totalorder %s130, %s131
      %p143 = scmp.eq.s32.totalorder %s32, 1
      %p144 = por %p142, %p143
      %p146 = scmp.ne.s32.totalorder %s131, %s145
      %p147 = scmp.eq.s32.totalorder %s32, 0
      %p148 = por %p146, %p147
      %s149 = ssub.s32 %s26, %s33
      %p150 = scmp.eq.s32.totalorder %s149, 0
      %s152 = sadd.s32 %s151, 1
      %s153 = scalar_select %p150, %s151, %s152
      %p156 = pneg %p150
      %p157 = scmp.eq.s32.totalorder %s26, 1
      %p158 = por %p156, %p157
      %p159 = scmp.ne.s32.totalorder %s151, %s154
      %p160 = scmp.eq.s32.totalorder %s26, 0
      %p161 = por %p159, %p160
      %p162 = scmp.ne.s32.totalorder %s151, %s154
      %p163 = scmp.eq.s32.totalorder %s31, 1
      %p164 = por %p162, %p163
      %p165 = scmp.ne.s32.totalorder %s154, %s155
      %p166 = scmp.eq.s32.totalorder %s31, 0
      %p167 = por %p165, %p166
      %p168 = scmp.ne.s32.totalorder %s154, %s155
      %p169 = scmp.eq.s32.totalorder %s32, 1
      %p170 = por %p168, %p169
      %p172 = scmp.ne.s32.totalorder %s155, %s171
      %p173 = scmp.eq.s32.totalorder %s32, 0
      %p174 = por %p172, %p173
      %s175 = ssub.s32 %s26, %s33
      %p176 = scmp.eq.s32.totalorder %s175, 0
      %s178 = sadd.s32 %s177, 1
      %s179 = scalar_select %p176, %s177, %s178
      %p182 = pneg %p176
      %p183 = scmp.eq.s32.totalorder %s26, 1
      %p184 = por %p182, %p183
      %p185 = scmp.ne.s32.totalorder %s177, %s180
      %p186 = scmp.eq.s32.totalorder %s26, 0
      %p187 = por %p185, %p186
      %p188 = scmp.ne.s32.totalorder %s177, %s180
      %p189 = scmp.eq.s32.totalorder %s31, 1
      %p190 = por %p188, %p189
      %p191 = scmp.ne.s32.totalorder %s180, %s181
      %p192 = scmp.eq.s32.totalorder %s31, 0
      %p193 = por %p191, %p192
      %p194 = scmp.ne.s32.totalorder %s180, %s181
      %p195 = scmp.eq.s32.totalorder %s32, 1
      %p196 = por %p194, %p195
      %p198 = scmp.ne.s32.totalorder %s181, %s197
      %p199 = scmp.eq.s32.totalorder %s32, 0
      %p200 = por %p198, %p199
      %p201 = scmp.le.s32.totalorder 1, %s26
      %p202 = scmp.lt.s32.totalorder %s26, 3
      %p203 = pnand %p201, %p202
      %p204 = pneg %p203
      // Predicated region
      $region9: #{tpu_custom_call.1} parent=5 // pred_check
        _
      $region10: #{tpu_custom_call.1} parent=5 // pred_check_branch
        %206 = sbr.rel (%p203) target = $region12
      $region11: #{tpu_custom_call.1} parent=5 // pred_region
        %s207 = ssub.s32 %s26, 1
        // Predicated region
        $region13: #{tpu_custom_call.1} parent=11 // pred_check
          %p208 = pneg %p99
        $region14: #{tpu_custom_call.1} parent=11 // pred_check_branch
          %210 = sbr.rel (%p208) target = $region16
        $region15: #{tpu_custom_call.1} parent=11 // pred_region
          %212 = vsyncadd [#allocation6], 0
          %s213 = sshll.u32 %s2, 4
          %s214 = int_to_ptr.hbm [resolvable:$true] %s213
          %s215 = sshll.u32 [#allocation7], 4
          %s216 = int_to_ptr.vmem [resolvable:$true] %s215
          %221 = dma.hbm_to_vmem [thread:$0]  %s214, 512, %s216, [#allocation6], 128, 128, 8
        $region16: #{tpu_custom_call.1} parent=11 // pred_fallthru
          _
        // Predicated region
        $region17: #{tpu_custom_call.1} parent=11 // pred_check
          %p222 = pneg %p120
        $region18: #{tpu_custom_call.1} parent=11 // pred_check_branch
          %224 = sbr.rel (%p222) target = $region20
        $region19: #{tpu_custom_call.1} parent=11 // pred_region
          %226 = vsyncadd [#allocation9], 0
          %s227 = sshll.u32 %s3, 4
          %s228 = int_to_ptr.hbm [resolvable:$true] %s227
          %s229 = sshll.u32 [#allocation8], 4
          %s230 = int_to_ptr.vmem [resolvable:$true] %s229
          %235 = dma.hbm_to_vmem [thread:$0]  %s228, 512, %s230, [#allocation9], 128, 128, 8
        $region20: #{tpu_custom_call.1} parent=11 // pred_fallthru
          _
        // Predicated region
        $region21: #{tpu_custom_call.1} parent=11 // pred_check
          %p236 = pneg %p141
        $region22: #{tpu_custom_call.1} parent=11 // pred_check_branch
          %238 = sbr.rel (%p236) target = $region24
        $region23: #{tpu_custom_call.1} parent=11 // pred_region
          _
        $region24: #{tpu_custom_call.1} parent=11 // pred_fallthru
          _
      $region12: #{tpu_custom_call.1} parent=5 // pred_fallthru
        _
      %p239 = scmp.lt.s32.totalorder %s26, 2
      // Predicated region
      $region25: #{tpu_custom_call.1} parent=5 // pred_check
        %p240 = pneg %p239
      $region26: #{tpu_custom_call.1} parent=5 // pred_check_branch
        %242 = sbr.rel (%p240) target = $region28
      $region27: #{tpu_custom_call.1} parent=5 // pred_region
        // Predicated region
        $region29: #{tpu_custom_call.1} parent=27 // pred_check
          %p243 = pneg %p46
        $region30: #{tpu_custom_call.1} parent=27 // pred_check_branch
          %245 = sbr.rel (%p243) target = $region32
        $region31: #{tpu_custom_call.1} parent=27 // pred_region
          %s246 = sand.u32 %s36, 1
          %s247 = scalar_lea.sflag [#allocation3], %s246
          %s248 = sand.u32 %s36, 1
          %s249 = smul.addr %s248, 8
          %s250 = scalar_lea.vmem [#allocation2], %s249
          %252 = vsyncadd %s247, 0
          %s253 = smul.addr %s26, 8
          %s254 = scalar_lea.hbm %s0, %s253
          %s256 = sshll.u32 %s254, 4
          %s257 = int_to_ptr.hbm [resolvable:$true] %s256
          %s258 = sshll.u32 %s250, 4
          %s259 = int_to_ptr.vmem [resolvable:$true] %s258
          %261 = dma.hbm_to_vmem [thread:$0]  %s257, 128, %s259, %s247
        $region32: #{tpu_custom_call.1} parent=27 // pred_fallthru
          _
        // Predicated region
        $region33: #{tpu_custom_call.1} parent=27 // pred_check
          %p262 = pneg %p72
        $region34: #{tpu_custom_call.1} parent=27 // pred_check_branch
          %264 = sbr.rel (%p262) target = $region36
        $region35: #{tpu_custom_call.1} parent=27 // pred_region
          %s265 = sand.u32 %s26, 1
          %s266 = scalar_lea.sflag [#allocation6], %s265
          %s267 = sand.u32 %s62, 1
          %s268 = smul.addr %s267, 8
          %s269 = scalar_lea.vmem [#allocation5], %s268
          %271 = vsyncadd %s266, 0
          %s272 = smul.addr %s26, 8
          %s273 = scalar_lea.hbm %s1, %s272
          %s275 = sshll.u32 %s273, 4
          %s276 = int_to_ptr.hbm [resolvable:$true] %s275
          %s277 = sshll.u32 %s269, 4
          %s278 = int_to_ptr.vmem [resolvable:$true] %s277
          %280 = dma.hbm_to_vmem [thread:$0]  %s276, 128, %s278, %s266
        $region36: #{tpu_custom_call.1} parent=27 // pred_fallthru
          _
      $region28: #{tpu_custom_call.1} parent=5 // pred_fallthru
        _
      %p281 = scmp.le.s32.totalorder 1, %s26
      %p282 = scmp.lt.s32.totalorder %s26, 3
      %p283 = pnand %p281, %p282
      %p284 = pneg %p283
      // Predicated region
      $region37: #{tpu_custom_call.1} parent=5 // pred_check
        _
      $region38: #{tpu_custom_call.1} parent=5 // pred_check_branch
        %286 = sbr.rel (%p283) target = $region40
      $region39: #{tpu_custom_call.1} parent=5 // pred_region
        %s287 = ssub.s32 %s26, 1
        %s288 = sand.u32 %s39, 1
        %s289 = scalar_lea.sflag [#allocation3], %s288
        %s290 = sand.u32 %s39, 1
        %s291 = smul.addr %s290, 8
        %s292 = scalar_lea.vmem [#allocation2], %s291
        // Predicated region
        $region41: #{tpu_custom_call.1} parent=39 // pred_check
          %p293 = pneg %p52
        $region42: #{tpu_custom_call.1} parent=39 // pred_check_branch
          %295 = sbr.rel (%p293) target = $region44
        $region43: #{tpu_custom_call.1} parent=39 // pred_region
          %297 = dma.done %s289, 128
        $region44: #{tpu_custom_call.1} parent=39 // pred_fallthru
          _
        %s298 = sand.u32 %s31, 1
        %s299 = scalar_lea.sflag [#allocation6], %s298
        %s300 = sand.u32 %s65, 1
        %s301 = smul.addr %s300, 8
        %s302 = scalar_lea.vmem [#allocation5], %s301
        // Predicated region
        $region45: #{tpu_custom_call.1} parent=39 // pred_check
          %p303 = pneg %p78
        $region46: #{tpu_custom_call.1} parent=39 // pred_check_branch
          %305 = sbr.rel (%p303) target = $region48
        $region47: #{tpu_custom_call.1} parent=39 // pred_region
          %307 = dma.done %s299, 128
        $region48: #{tpu_custom_call.1} parent=39 // pred_fallthru
          _
        // Predicated region
        $region49: #{tpu_custom_call.1} parent=39 // pred_check
          %p308 = pneg %p99
        $region50: #{tpu_custom_call.1} parent=39 // pred_check_branch
          %310 = sbr.rel (%p308) target = $region52
        $region51: #{tpu_custom_call.1} parent=39 // pred_region
          %312 = dma.done [#allocation6], 512
        $region52: #{tpu_custom_call.1} parent=39 // pred_fallthru
          _
        // Predicated region
        $region53: #{tpu_custom_call.1} parent=39 // pred_check
          %p313 = pneg %p120
        $region54: #{tpu_custom_call.1} parent=39 // pred_check_branch
          %315 = sbr.rel (%p313) target = $region56
        $region55: #{tpu_custom_call.1} parent=39 // pred_region
          %317 = dma.done [#allocation9], 512
        $region56: #{tpu_custom_call.1} parent=39 // pred_fallthru
          _
        %s318 = sand.u32 %s39, 1
        %s319 = scalar_lea.sflag [#allocation3], %s318
        %s320 = sand.u32 %s39, 1
        %s321 = smul.addr %s320, 8
        %s322 = scalar_lea.vmem [#allocation2], %s321
        %p323 = pneg %p52
        %p324 = pneg %p49
        %s325 = sand.u32 %s31, 1
        %s326 = scalar_lea.sflag [#allocation6], %s325
        %s327 = sand.u32 %s65, 1
        %s328 = smul.addr %s327, 8
        %s329 = scalar_lea.vmem [#allocation5], %s328
        %p330 = pneg %p78
        %p331 = pneg %p75
        %p332 = pneg %p99
        %p333 = pneg %p96
        %p334 = pneg %p120
        %p335 = pneg %p117
        %p336 = pneg %p141
        %p337 = pneg %p138
        %p338 = pneg %p167
        %p339 = pneg %p164
        %s340 = sand.u32 %s154, 1
        %s341 = scalar_lea.sflag [#allocation4], %s340
        %s342 = sand.u32 %s154, 1
        %s343 = smul.addr %s342, 8
        %s344 = scalar_lea.vmem [#allocation10], %s343
        %p345 = pneg %p193
        %p346 = pneg %p190
        %s347 = sand.u32 %s180, 1
        %s348 = scalar_lea.sflag [#allocation12], %s347
        %s349 = sand.u32 %s180, 1
        %s350 = smul.addr %s349, 8
        %s351 = scalar_lea.vmem [#allocation11], %s350
        %v352 = vld [vmem:[%s292] sm:$0xff]
        %v353 = vld [vmem:[%s302] sm:$0xff]
        %v354 = vld [vmem:[#allocation7] sm:$0xff]
        %v355 = vld [vmem:[#allocation7 + $0x8] sm:$0xff]
        %v356 = vld [vmem:[#allocation7 + $0x10] sm:$0xff]
        %v357 = vld [vmem:[#allocation7 + $0x18] sm:$0xff]
        %v358 = vld [vmem:[#allocation8] sm:$0xff]
        %v359 = vld [vmem:[#allocation8 + $0x8] sm:$0xff]
        %v360 = vld [vmem:[#allocation8 + $0x10] sm:$0xff]
        %v361 = vld [vmem:[#allocation8 + $0x18] sm:$0xff]
        %vm362 = vcmask 261120
        %v364 = vsel %vm362, %v353, 0
        %366 = vmatpush.msra.mxu0 0.0
        %367 = vmatpush.msra.mxu0 0.0
        %368 = vmatpush.msra.mxu0 0.0
        %369 = vmatpush.msra.mxu0 0.0
        %370 = vmatpush.msra.mxu0 0.0
        %371 = vmatpush.msra.mxu0 0.0
        %372 = vmatpush.msra.mxu0 0.0
        %373 = vmatpush.msra.mxu0 0.0
        %374 = vmatpush.msra.mxu0 0.0
        %375 = vmatpush.msra.mxu0 0.0
        %376 = vmatpush.msra.mxu0 0.0
        %377 = vmatpush.msra.mxu0 0.0
        %378 = vmatpush.msra.mxu0 %v361
        %379 = vmatpush.msra.mxu0 %v360
        %380 = vmatpush.msra.mxu0 %v359
        %381 = vmatpush.msra.mxu0 %v358
        %382 = vmatmul.f32.gmra.mxu0 %v364
        %v383 = vpop.f32.mrf.mxu0
        %v384 = vadd.f32 0.0, %v383
        %385 = vdwg.mxu0
        %v386 = vld [vmem:[%s4] sm:$0x1]
        %v388 = vperm.slane %v386, 0
        %v391 = vsel %vm362, %v352, 0
        %393 = vmatpush.msra.mxu0 0.0
        %394 = vmatpush.msra.mxu0 0.0
        %395 = vmatpush.msra.mxu0 0.0
        %396 = vmatpush.msra.mxu0 0.0
        %397 = vmatpush.msra.mxu0 0.0
        %398 = vmatpush.msra.mxu0 0.0
        %399 = vmatpush.msra.mxu0 0.0
        %400 = vmatpush.msra.mxu0 0.0
        %401 = vmatpush.msra.mxu0 0.0
        %402 = vmatpush.msra.mxu0 0.0
        %403 = vmatpush.msra.mxu0 0.0
        %404 = vmatpush.msra.mxu0 0.0
        %405 = vmatpush.msra.mxu0 %v357
        %406 = vmatpush.msra.mxu0 %v356
        %407 = vmatpush.msra.mxu0 %v355
        %408 = vmatpush.msra.mxu0 %v354
        %409 = vmatmul.f32.gmra.mxu0 %v391
        %v410 = vpop.f32.mrf.mxu0
        %v411 = vadd.f32 %v388, %v410
        %412 = vdwg.mxu0
        %vm413 = vcmask 523264
        %414 = vst.msk [vmem:[%s344] sm:$0xff] %vm413, %v411
        %415 = vst.msk [vmem:[%s351] sm:$0xff] %vm413, %v384
        %s416 = sand.u32 %s154, 1
        %s417 = scalar_lea.sflag [#allocation4], %s416
        %s418 = sand.u32 %s154, 1
        %s419 = smul.addr %s418, 8
        %s420 = scalar_lea.vmem [#allocation10], %s419
        %s421 = sand.u32 %s180, 1
        %s422 = scalar_lea.sflag [#allocation12], %s421
        %s423 = sand.u32 %s180, 1
        %s424 = smul.addr %s423, 8
        %s425 = scalar_lea.vmem [#allocation11], %s424
        // Predicated region
        $region57: #{tpu_custom_call.1} parent=39 // pred_check
          %p426 = pneg %p164
        $region58: #{tpu_custom_call.1} parent=39 // pred_check_branch
          %428 = sbr.rel (%p426) target = $region60
        $region59: #{tpu_custom_call.1} parent=39 // pred_region
          %430 = vsyncadd %s417, 0
          %s431 = smul.addr %s31, 8
          %s432 = scalar_lea.hbm %s5, %s431
          %s434 = sshll.u32 %s420, 4
          %s435 = int_to_ptr.vmem [resolvable:$true] %s434
          %s436 = sshll.u32 %s432, 4
          %s437 = int_to_ptr.hbm [resolvable:$true] %s436
          %439 = dma.vmem_to_hbm [thread:$0]  %s435, 128, %s437, %s417
        $region60: #{tpu_custom_call.1} parent=39 // pred_fallthru
          _
        // Predicated region
        $region61: #{tpu_custom_call.1} parent=39 // pred_check
          %p440 = pneg %p190
        $region62: #{tpu_custom_call.1} parent=39 // pred_check_branch
          %442 = sbr.rel (%p440) target = $region64
        $region63: #{tpu_custom_call.1} parent=39 // pred_region
          %444 = vsyncadd %s422, 0
          %s445 = smul.addr %s31, 8
          %s446 = scalar_lea.hbm %s6, %s445
          %s448 = sshll.u32 %s425, 4
          %s449 = int_to_ptr.vmem [resolvable:$true] %s448
          %s450 = sshll.u32 %s446, 4
          %s451 = int_to_ptr.hbm [resolvable:$true] %s450
          %453 = dma.vmem_to_hbm [thread:$0]  %s449, 128, %s451, %s422
        $region64: #{tpu_custom_call.1} parent=39 // pred_fallthru
          _
      $region40: #{tpu_custom_call.1} parent=5 // pred_fallthru
        _
      %p454 = scmp.le.s32.totalorder 2, %s26
      // Predicated region
      $region65: #{tpu_custom_call.1} parent=5 // pred_check
        %p455 = pneg %p454
      $region66: #{tpu_custom_call.1} parent=5 // pred_check_branch
        %457 = sbr.rel (%p455) target = $region68
      $region67: #{tpu_custom_call.1} parent=5 // pred_region
        %s458 = ssub.s32 %s26, 2
        // Predicated region
        $region69: #{tpu_custom_call.1} parent=67 // pred_check
          %p459 = pneg %p170
        $region70: #{tpu_custom_call.1} parent=67 // pred_check_branch
          %461 = sbr.rel (%p459) target = $region72
        $region71: #{tpu_custom_call.1} parent=67 // pred_region
          %s462 = sand.u32 %s155, 1
          %s463 = scalar_lea.sflag [#allocation4], %s462
          %s464 = sand.u32 %s155, 1
          %s465 = smul.addr %s464, 8
          %s466 = scalar_lea.vmem [#allocation10], %s465
          %468 = dma.done %s463, 128
        $region72: #{tpu_custom_call.1} parent=67 // pred_fallthru
          _
        // Predicated region
        $region73: #{tpu_custom_call.1} parent=67 // pred_check
          %p469 = pneg %p196
        $region74: #{tpu_custom_call.1} parent=67 // pred_check_branch
          %471 = sbr.rel (%p469) target = $region76
        $region75: #{tpu_custom_call.1} parent=67 // pred_region
          %s472 = sand.u32 %s181, 1
          %s473 = scalar_lea.sflag [#allocation12], %s472
          %s474 = sand.u32 %s181, 1
          %s475 = smul.addr %s474, 8
          %s476 = scalar_lea.vmem [#allocation11], %s475
          %478 = dma.done %s473, 128
        $region76: #{tpu_custom_call.1} parent=67 // pred_fallthru
          _
      $region68: #{tpu_custom_call.1} parent=5 // pred_fallthru
        _
    $region6: #{tpu_custom_call.1} parent=1 // loop_footer
      %s30 = sadd.s32 1, %s26
    $region7: #{tpu_custom_call.1} parent=1 // loop_footer_branch
      %25 = sbr.rel target = $region3
    $region8: #{tpu_custom_call.1} parent=1 // loop_exit
      _
    %479 = vsyncpa [#allocation3], 1
    %s480 = scalar_lea.sflag [#allocation3], 1
    %481 = vsyncpa %s480, 1
    %482 = vsyncpa [#allocation6], 1
    %s483 = scalar_lea.sflag [#allocation6], 1
    %484 = vsyncpa %s483, 1
    %485 = vsyncpa [#allocation9], 1
    %486 = vsyncpa [#allocation4], 1
    %s487 = scalar_lea.sflag [#allocation4], 1
    %488 = vsyncpa %s487, 1
    %489 = vsyncpa [#allocation12], 1
    %s490 = scalar_lea.sflag [#allocation12], 1
    %491 = vsyncpa %s490, 1

</llo_original>
